<compile_context>
chip_gen: v7x
topology: tpu7x:2x2x1
jax: 0.10.0
libtpu: 0.0.40
codegen_flags: <defaults>
</compile_context>

<pallas_src>
import functools

import jax
import jax.numpy as jnp
import numpy as np
from jax.experimental import pallas as pl
from jax.experimental.pallas import tpu as pltpu


# --------------------------------- kernels ---------------------------------

def _stats_kernel(x_ref, c_ref, sx_ref, sxx_ref, *, hw, hw_tile, mask_tail):
    """Pass 1: accumulate per-group sum(y) and sum(y y^T) with y = x - pre_shift,
    over the (N-block, hw-tile) reduction axes, into the (resident) output blocks.
    Grid = (split, group, n_block, hw_tile); the trailing two axes are the
    reduction ("arbitrary") axes."""
    nblk = pl.program_id(2)
    t = pl.program_id(3)

    @pl.when(jnp.logical_and(nblk == 0, t == 0))
    def _init():
        sx_ref[...] = jnp.zeros_like(sx_ref)
        sxx_ref[...] = jnp.zeros_like(sxx_ref)

    c = c_ref[0].astype(jnp.float32)                       # (d, 1)
    if mask_tail:
        valid = (t * hw_tile + jax.lax.broadcasted_iota(
            jnp.int32, (x_ref.shape[2], hw_tile), 1)) < hw

    sy = sx_ref[0, 0]                                      # (d, 1)
    syy = sxx_ref[0, 0]                                    # (d, d)
    for n in range(x_ref.shape[0]):                        # static small NB loop
        # single cast input->f32 (stats matmul kept in f32 for conditioning)
        y = x_ref[n, 0].astype(jnp.float32) - c            # (d, hw_tile)
        if mask_tail:
            y = jnp.where(valid, y, 0.0)
        sy = sy + jnp.sum(y, axis=-1, keepdims=True)
        # MXU-native A @ A^T form: contract the lane (m) axis of both operands.
        syy = syy + jax.lax.dot_general(
            y, y, (((1,), (1,)), ((), ())),
            preferred_element_type=jnp.float32)
    sx_ref[0, 0] = sy
    sxx_ref[0, 0] = syy


def _whiten_kernel(x_ref, wm_ref, shift_ref, o_ref, *, matmul_dtype):
    """Pass 2: out = wm_w @ x + shift, with the affine scale folded into wm_w and
    (bias - wm_w @ mean) folded into shift. Lane-dense stores; bf16 MXU operands
    by default with f32 accumulation."""
    wm = wm_ref[0].astype(matmul_dtype)                    # (d, d)
    shift = shift_ref[0].astype(jnp.float32)               # (d, 1)
    for n in range(x_ref.shape[0]):                        # static small NB loop
        x = x_ref[n, 0].astype(matmul_dtype)               # (d, hw_tile)
        y = jnp.dot(wm, x, preferred_element_type=jnp.float32)
        o_ref[n, 0] = (y + shift).astype(o_ref.dtype)


# ------------------------------ tiling helpers ------------------------------

def _vmem_budget():
    """(scoped vmem limit, target bytes per streamed block).  Conservative 32/4 MiB
    everywhere; bumped to 64/8 MiB on 128-MiB-VMEM parts (v5e/v6e)."""
    vmem_limit, target = 32 * 1024 * 1024, 4 * 1024 * 1024
    try:
        info = pltpu.get_tpu_info()
        cap = getattr(info, "vmem_capacity_bytes", None)
        if cap is not None and cap >= 100 * 1024 * 1024:
            vmem_limit, target = 64 * 1024 * 1024, 8 * 1024 * 1024
    except Exception:
        pass
    return vmem_limit, target


def _choose_tiles(n_per_split, d, hw, itemsize, target_bytes,
                  hw_tile=None, batch_block=None):
    """Pick (batch_block, hw_tile, n_hw_tiles).  hw_tile is a multiple of 128 (or
    the full extent); a partial tail tile is allowed (masked in the stats kernel,
    discarded on store in the whiten kernel).  batch_block groups several batch
    elements per grid step when a single (d, hw_tile) block is small."""
    if hw_tile is None:
        if hw <= 128 or d * hw * itemsize <= target_bytes:
            hw_tile = hw
        else:
            max_lanes = max(128, (target_bytes // (d * itemsize)) // 128 * 128)
            hw_tile = min(max_lanes, (hw // 128) * 128)
    assert hw_tile <= hw and (hw_tile == hw or hw_tile % 128 == 0)
    n_hw_tiles = (hw + hw_tile - 1) // hw_tile

    if batch_block is None:
        block_bytes = max(1, d * hw_tile * itemsize)
        nb_target = max(1, target_bytes // block_bytes)
        batch_block = 1
        for cand in range(1, n_per_split + 1):
            if n_per_split % cand == 0 and cand <= nb_target:
                batch_block = cand
    assert n_per_split % batch_block == 0
    return batch_block, hw_tile, n_hw_tiles


# ---------------------- tiny (g,d,d) math kept in plain JAX ----------------------

def _newton_schulz(sum_y, sum_yy, pre_shift, m_total, T, eps):
    """Given centered partial sums (y = x - pre_shift), build Sigma, trace-normalize
    and run T Newton-Schulz iterations.  Returns (mean, whitening matrix)."""
    g, d, _ = sum_y.shape
    inv_m = 1.0 / float(m_total)
    mean_y = sum_y * inv_m                                   # (g, d, 1)
    mean = mean_y + pre_shift
    eye = jnp.broadcast_to(jnp.eye(d, dtype=jnp.float32), (g, d, d))
    sigma = (eps * eye + sum_yy * inv_m
             - jnp.einsum("gdo,geo->gde", mean_y, mean_y))
    rtr = 1.0 / jnp.sum(sigma * eye, axis=(1, 2), keepdims=True)
    sigma_n = sigma * rtr
    p = eye
    for _ in range(T):
        p3 = jnp.einsum("gij,gjk,gkl->gil", p, p, p)
        p = 1.5 * p - 0.5 * jnp.einsum("gij,gjk->gik", p3, sigma_n)
    wm = p * jnp.sqrt(rtr)
    return mean, wm


# --------------------------------- forward ---------------------------------

def iternorm_forward(X, weight, bias, running_mean, running_wm,
                     *, num_groups, num_channels, T=5, eps=1e-5,
                     momentum=0.1, training=True,
                     matmul_dtype=jnp.bfloat16, hw_tile=None, batch_block=None):
    """IterNorm forward.

    X: (N, C, H, W), C = num_groups * num_channels
    weight/bias: (1, C, 1, 1) or None; running_mean: (g, d, 1); running_wm: (g, d, d)
    Returns (Xn, new_running_mean, new_running_wm).
    """
    N, C, H, W = X.shape
    g, d = num_groups, num_channels
    assert C == g * d
    HW = H * W
    m_total = N * HW
    itemsize = X.dtype.itemsize

    if weight is None:
        weight = jnp.ones((1, C, 1, 1), jnp.float32)
    if bias is None:
        bias = jnp.zeros((1, C, 1, 1), jnp.float32)

    vmem_limit, target_bytes = _vmem_budget()

    # Split the N reduction axis into 2 "parallel" halves (per-half partial sums)
    # so v7x's second TensorCore has stats work even when g == 1.
    n_splits = 2 if (training and N >= 2 and N % 2 == 0) else 1
    # TODO(synk): split over hw tiles instead when N is odd / 1 on v7x.
    n_per_split = N // n_splits
    nb, hw_t, n_hw_tiles = _choose_tiles(
        n_per_split, d, HW, itemsize, target_bytes, hw_tile, batch_block)
    nb_per_split = n_per_split // nb
    mask_tail = (HW % hw_t) != 0

    # Free (no-copy) views: NCHW -> (N, g, d, H*W).  Output comes back in the same
    # layout, so no HBM transpose passes on either side.
    x_view = X.reshape(N, g, d, HW)
    w_gd1 = weight.reshape(g, d, 1).astype(jnp.float32)
    b_gd1 = bias.reshape(g, d, 1).astype(jnp.float32)
    rm_f32 = running_mean.astype(jnp.float32)
    rwm_f32 = running_wm.astype(jnp.float32)

    if training:
        # Cheap pre-shift around running_mean keeps the f32 covariance accumulation
        # well conditioned (exact math either way; identical at init where rm == 0).
        pre_shift = rm_f32
        stats_kernel = functools.partial(
            _stats_kernel, hw=HW, hw_tile=hw_t, mask_tail=mask_tail)
        stats_cost = pl.CostEstimate(
            flops=2 * g * d * d * m_total,
            transcendentals=0,
            bytes_accessed=N * C * HW * itemsize
            + (n_splits + 1) * g * d * (d + 1) * 4)
        sum_y, sum_yy = pl.pallas_call(
            stats_kernel,
            out_shape=(
                jax.ShapeDtypeStruct((n_splits, g, d, 1), jnp.float32),
                jax.ShapeDtypeStruct((n_splits, g, d, d), jnp.float32),
            ),
            grid_spec=pltpu.PrefetchScalarGridSpec(
                num_scalar_prefetch=0,
                grid=(n_splits, g, nb_per_split, n_hw_tiles),
                in_specs=[
                    pl.BlockSpec(
                        (nb, 1, d, hw_t),
                        lambda s, i, n, t: (s * nb_per_split + n, i, 0, t)),
                    pl.BlockSpec((1, d, 1), lambda s, i, n, t: (i, 0, 0)),
                ],
                out_specs=[
                    pl.BlockSpec((1, 1, d, 1), lambda s, i, n, t: (s, i, 0, 0)),
                    pl.BlockSpec((1, 1, d, d), lambda s, i, n, t: (s, i, 0, 0)),
                ],
            ),
            compiler_params=pltpu.CompilerParams(
                dimension_semantics=("parallel", "parallel",
                                     "arbitrary", "arbitrary"),
                vmem_limit_bytes=vmem_limit),
            cost_estimate=stats_cost,
        )(x_view, pre_shift)

        # Reduce the per-split partials and do the tiny (g,d,d) Newton-Schulz work
        # in plain JAX (negligible FLOPs; keeps the hot kernel simple).
        sum_y = jnp.sum(sum_y, axis=0)
        sum_yy = jnp.sum(sum_yy, axis=0)
        mean, wm = _newton_schulz(sum_y, sum_yy, pre_shift, m_total, T, eps)
        new_running_mean = momentum * mean + (1.0 - momentum) * running_mean
        new_running_wm = momentum * wm + (1.0 - momentum) * running_wm
    else:
        mean, wm = rm_f32, rwm_f32
        new_running_mean, new_running_wm = running_mean, running_wm

    # Fold the affine scale into the whitening matrix and the mean subtraction into
    # the bias so the big pass is one matmul + add:
    #   out = (w * wm) @ x + (b - (w * wm) @ mu)
    wm_w = wm * w_gd1
    shift = b_gd1 - jnp.matmul(wm_w, mean)

    # TODO(synk): pack multiple groups per block when d < 8 to fill vreg sublanes.
    whiten_kernel = functools.partial(_whiten_kernel, matmul_dtype=matmul_dtype)
    whiten_cost = pl.CostEstimate(
        flops=2 * g * d * d * m_total,
        transcendentals=0,
        bytes_accessed=2 * N * C * HW * itemsize + g * d * (d + 1) * 4)
    xn = pl.pallas_call(
        whiten_kernel,
        out_shape=jax.ShapeDtypeStruct((N, g, d, HW), X.dtype),
        grid_spec=pltpu.PrefetchScalarGridSpec(
            num_scalar_prefetch=0,
            grid=(N // nb, g, n_hw_tiles),
            in_specs=[
                pl.BlockSpec((nb, 1, d, hw_t), lambda n, i, t: (n, i, 0, t)),
                pl.BlockSpec((1, d, d), lambda n, i, t: (i, 0, 0)),
                pl.BlockSpec((1, d, 1), lambda n, i, t: (i, 0, 0)),
            ],
            out_specs=pl.BlockSpec((nb, 1, d, hw_t),
                                   lambda n, i, t: (n, i, 0, t)),
        ),
        compiler_params=pltpu.CompilerParams(
            dimension_semantics=("parallel", "parallel", "parallel"),
            vmem_limit_bytes=vmem_limit),
        cost_estimate=whiten_cost,
    )(x_view, wm_w, shift)

    Xn = xn.reshape(N, C, H, W)   # free view back to NCHW
    return Xn, new_running_mean, new_running_wm


# ----------------------------- pure-JAX references -----------------------------

def _reference_forward(X, weight, bias, g, d, T, eps):
    """Mirrors the PyTorch autograd.Function forward in training mode (f32)."""
    N, C, H, W = X.shape
    m = N * H * W
    x = jnp.transpose(X, (1, 0, 2, 3)).reshape(g, d, m)
    mean = jnp.mean(x, axis=-1, keepdims=True)
    xc = x - mean
    eye = jnp.broadcast_to(jnp.eye(d, dtype=jnp.float32), (g, d, d))
    sigma = eps * eye + jnp.einsum("gdm,gem->gde", xc, xc) / m
    rtr = 1.0 / jnp.sum(sigma * eye, axis=(1, 2), keepdims=True)
    sigma_n = sigma * rtr
    P = eye
    for _ in range(T):
        P3 = jnp.einsum("gij,gjk,gkl->gil", P, P, P)
        P = 1.5 * P - 0.5 * jnp.einsum("gij,gjk->gik", P3, sigma_n)
    wm = P * jnp.sqrt(rtr)
    xn = jnp.einsum("gij,gjm->gim", wm, xc)
    Xn = jnp.transpose(xn.reshape(C, N, H, W), (1, 0, 2, 3))
    return Xn * weight + bias, mean, wm


def _reference_eval(X, weight, bias, running_mean, running_wm, g, d):
    N, C, H, W = X.shape
    x = jnp.transpose(X, (1, 0, 2, 3)).reshape(g, d, -1)
    xc = x - running_mean
    xn = jnp.einsum("gij,gjm->gim", running_wm, xc)
    Xn = jnp.transpose(xn.reshape(C, N, H, W), (1, 0, 2, 3))
    return Xn * weight + bias


if __name__ == "__main__":
    def run_case(num_features, num_groups, N, H, W, key, *,
                 matmul_dtype=jnp.bfloat16, hw_tile=None,
                 out_rtol=5e-2, out_atol=5e-2):
        num_channels = num_features // num_groups
        T, eps, momentum = 5, 1e-5, 0.1
        X = jax.random.normal(key, (N, num_features, H, W), dtype=jnp.float32)
        # reset_parameters(): weight = 1, bias = 0
        weight = jnp.ones((1, num_features, 1, 1), jnp.float32)
        bias = jnp.zeros((1, num_features, 1, 1), jnp.float32)
        running_mean = jnp.zeros((num_groups, num_channels, 1), jnp.float32)
        running_wm = jnp.broadcast_to(
            jnp.eye(num_channels, dtype=jnp.float32),
            (num_groups, num_channels, num_channels))

        Xn, new_rm, new_rwm = iternorm_forward(
            X, weight, bias, running_mean, running_wm,
            num_groups=num_groups, num_channels=num_channels,
            T=T, eps=eps, momentum=momentum, training=True,
            matmul_dtype=matmul_dtype, hw_tile=hw_tile)
        jax.block_until_ready((Xn, new_rm, new_rwm))

        Xn_ref, mean_ref, wm_ref = _reference_forward(
            X, weight, bias, num_groups, num_channels, T, eps)
        np.testing.assert_allclose(np.asarray(Xn), np.asarray(Xn_ref),
                                   rtol=out_rtol, atol=out_atol)
        np.testing.assert_allclose(
            np.asarray(new_rm),
            np.asarray(momentum * mean_ref + (1 - momentum) * running_mean),
            rtol=5e-4, atol=5e-4)
        np.testing.assert_allclose(
            np.asarray(new_rwm),
            np.asarray(momentum * wm_ref + (1 - momentum) * running_wm),
            rtol=5e-4, atol=5e-4)

        # eval mode reuses the whitening kernel with the running buffers
        Xn_eval, _, _ = iternorm_forward(
            X, weight, bias, new_rm, new_rwm,
            num_groups=num_groups, num_channels=num_channels,
            T=T, eps=eps, momentum=momentum, training=False,
            matmul_dtype=matmul_dtype, hw_tile=hw_tile)
        jax.block_until_ready(Xn_eval)
        Xn_eval_ref = _reference_eval(X, weight, bias, new_rm, new_rwm,
                                      num_groups, num_channels)
        np.testing.assert_allclose(np.asarray(Xn_eval), np.asarray(Xn_eval_ref),
                                   rtol=out_rtol, atol=out_atol)

    key = jax.random.PRNGKey(0)
    k1, k2, k3 = jax.random.split(key, 3)
    # IterNorm(num_features=4, num_groups=1): f32 MXU path, tight tolerance,
    # full-HW tile, split-N stats parallelism.
    run_case(4, 1, 2, 16, 16, k1, matmul_dtype=jnp.float32,
             out_rtol=5e-4, out_atol=5e-4)
    # Two groups + forced 128-lane hw tiles + bf16 MXU whiten path (default):
    # exercises the group grid axis and multi-tile stats accumulation.
    run_case(8, 2, 2, 16, 16, k2, hw_tile=128)
    # Non-128-divisible H*W (masked tail tile) + N-batched blocks, f32 path.
    run_case(8, 1, 4, 10, 13, k3, matmul_dtype=jnp.float32, hw_tile=128,
             out_rtol=5e-4, out_atol=5e-4)
    print("KERNEL_OK")
</pallas_src>

<mosaic_0001>
module attributes {stable_mosaic.version = 11 : i64} {
  func.func @_stats_kernel(%arg0: i32, %arg1: i32, %arg2: i32, %arg3: i32, %arg4: memref<1x1x4x256xf32, #tpu.memory_space<vmem>>, %arg5: memref<1x4x1xf32, #tpu.memory_space<vmem>>, %arg6: memref<1x1x4x1xf32, #tpu.memory_space<vmem>>, %arg7: memref<1x1x4x4xf32, #tpu.memory_space<vmem>>) attributes {dimension_semantics = [#tpu.dimension_semantics<parallel>, #tpu.dimension_semantics<parallel>, #tpu.dimension_semantics<arbitrary>, #tpu.dimension_semantics<arbitrary>], iteration_bounds = array<i64: 2, 1, 1, 1>, scalar_prefetch = 0 : i64, scratch_operands = 0 : i64, tpu.core_type = #tpu.core_type<tc>, window_params = [{transform_indices = @transform_0, window_bounds = array<i64: 1, 1, 4, 256>}, {transform_indices = @transform_1, window_bounds = array<i64: 1, 4, 1>}, {transform_indices = @transform_2, window_bounds = array<i64: 1, 1, 4, 1>}, {transform_indices = @transform_3, window_bounds = array<i64: 1, 1, 4, 4>}]} {
    %c0_i32 = arith.constant 0 : i32
    %0 = arith.cmpi eq, %arg2, %c0_i32 : i32
    %c0_i32_0 = arith.constant 0 : i32
    %1 = arith.cmpi eq, %arg3, %c0_i32_0 : i32
    %2 = arith.andi %0, %1 : i1
    %3 = arith.extui %2 : i1 to i32
    %c0_i32_1 = arith.constant 0 : i32
    %4 = arith.cmpi ne, %3, %c0_i32_1 : i32
    scf.if %4 {
      %cst_25 = arith.constant 0.000000e+00 : f32
      %26 = vector.broadcast %cst_25 : f32 to vector<1x1x4x1xf32>
      %c0_26 = arith.constant 0 : index
      %c0_27 = arith.constant 0 : index
      %c0_28 = arith.constant 0 : index
      %c0_29 = arith.constant 0 : index
      %27 = vector.load %arg6[%c0_26, %c0_27, %c0_28, %c0_29] : memref<1x1x4x1xf32, #tpu.memory_space<vmem>>, vector<1x1x4x1xf32>
      tpu.vector_store %arg6[%c0_26, %c0_27, %c0_28, %c0_29], %26 {strides = array<i32>} : memref<1x1x4x1xf32, #tpu.memory_space<vmem>>, vector<1x1x4x1xf32>,
      %cst_30 = arith.constant 0.000000e+00 : f32
      %28 = vector.broadcast %cst_30 : f32 to vector<1x1x4x4xf32>
      %c0_31 = arith.constant 0 : index
      %c0_32 = arith.constant 0 : index
      %c0_33 = arith.constant 0 : index
      %c0_34 = arith.constant 0 : index
      %29 = vector.load %arg7[%c0_31, %c0_32, %c0_33, %c0_34] : memref<1x1x4x4xf32, #tpu.memory_space<vmem>>, vector<1x1x4x4xf32>
      tpu.vector_store %arg7[%c0_31, %c0_32, %c0_33, %c0_34], %28 {strides = array<i32>} : memref<1x1x4x4xf32, #tpu.memory_space<vmem>>, vector<1x1x4x4xf32>,
    } else {
    }
    %c0 = arith.constant 0 : index
    %c0_2 = arith.constant 0 : index
    %c0_3 = arith.constant 0 : index
    %5 = vector.load %arg5[%c0, %c0_2, %c0_3] : memref<1x4x1xf32, #tpu.memory_space<vmem>>, vector<1x4x1xf32>
    %6 = vector.shape_cast %5 : vector<1x4x1xf32> to vector<4x1xf32>
    %c0_4 = arith.constant 0 : index
    %c0_5 = arith.constant 0 : index
    %c0_6 = arith.constant 0 : index
    %c0_7 = arith.constant 0 : index
    %7 = vector.load %arg6[%c0_4, %c0_5, %c0_6, %c0_7] : memref<1x1x4x1xf32, #tpu.memory_space<vmem>>, vector<1x1x4x1xf32>
    %8 = vector.shape_cast %7 : vector<1x1x4x1xf32> to vector<4x1xf32>
    %c0_8 = arith.constant 0 : index
    %c0_9 = arith.constant 0 : index
    %c0_10 = arith.constant 0 : index
    %c0_11 = arith.constant 0 : index
    %9 = vector.load %arg7[%c0_8, %c0_9, %c0_10, %c0_11] : memref<1x1x4x4xf32, #tpu.memory_space<vmem>>, vector<1x1x4x4xf32>
    %10 = vector.shape_cast %9 : vector<1x1x4x4xf32> to vector<4x4xf32>
    %c0_12 = arith.constant 0 : index
    %c0_13 = arith.constant 0 : index
    %c0_14 = arith.constant 0 : index
    %c0_15 = arith.constant 0 : index
    %11 = vector.load %arg4[%c0_12, %c0_13, %c0_14, %c0_15] : memref<1x1x4x256xf32, #tpu.memory_space<vmem>>, vector<1x1x4x256xf32>
    %12 = vector.shape_cast %11 : vector<1x1x4x256xf32> to vector<4x256xf32>
    %13 = vector.broadcast %6 : vector<4x1xf32> to vector<4x256xf32>
    %14 = arith.subf %12, %13 : vector<4x256xf32>
    %cst = arith.constant dense<0.000000e+00> : vector<4xf32>
    %15 = vector.multi_reduction <add>, %14, %cst [1] : vector<4x256xf32> to vector<4xf32>
    %16 = vector.shape_cast %15 : vector<4xf32> to vector<4x1xf32>
    %17 = arith.addf %8, %16 : vector<4x1xf32>
    %cst_16 = arith.constant dense<0.000000e+00> : vector<4x4xf32>
    %18 = tpu.matmul %14, %14, %cst_16 {dimension_numbers = #tpu.dot_dimension_numbers<[1], [1], [0], [0], [0, 0, 1, 0], [], []>} : vector<4x256xf32>, vector<4x256xf32>, vector<4x4xf32> -> vector<4x4xf32>
    %19 = arith.addf %10, %18 : vector<4x4xf32>
    %c0_17 = arith.constant 0 : index
    %c0_18 = arith.constant 0 : index
    %c0_19 = arith.constant 0 : index
    %c0_20 = arith.constant 0 : index
    %20 = vector.load %arg6[%c0_17, %c0_18, %c0_19, %c0_20] : memref<1x1x4x1xf32, #tpu.memory_space<vmem>>, vector<1x1x4x1xf32>
    %21 = vector.shape_cast %20 : vector<1x1x4x1xf32> to vector<4x1xf32>
    %22 = vector.shape_cast %17 : vector<4x1xf32> to vector<1x1x4x1xf32>
    tpu.vector_store %arg6[%c0_17, %c0_18, %c0_19, %c0_20], %22 {strides = array<i32>} : memref<1x1x4x1xf32, #tpu.memory_space<vmem>>, vector<1x1x4x1xf32>,
    %c0_21 = arith.constant 0 : index
    %c0_22 = arith.constant 0 : index
    %c0_23 = arith.constant 0 : index
    %c0_24 = arith.constant 0 : index
    %23 = vector.load %arg7[%c0_21, %c0_22, %c0_23, %c0_24] : memref<1x1x4x4xf32, #tpu.memory_space<vmem>>, vector<1x1x4x4xf32>
    %24 = vector.shape_cast %23 : vector<1x1x4x4xf32> to vector<4x4xf32>
    %25 = vector.shape_cast %19 : vector<4x4xf32> to vector<1x1x4x4xf32>
    tpu.vector_store %arg7[%c0_21, %c0_22, %c0_23, %c0_24], %25 {strides = array<i32>} : memref<1x1x4x4xf32, #tpu.memory_space<vmem>>, vector<1x1x4x4xf32>,
    return
  }
  func.func @transform_0(%arg0: i32, %arg1: i32, %arg2: i32, %arg3: i32) -> (i32, i32, i32, i32) {
    %c1_i32 = arith.constant 1 : i32
    %0 = arith.muli %arg0, %c1_i32 : i32
    %1 = arith.addi %0, %arg2 : i32
    %c0_i32 = arith.constant 0 : i32
    %c0_i32_0 = arith.constant 0 : i32
    return %1, %arg1, %c0_i32, %arg3 : i32, i32, i32, i32
  }
  func.func @transform_1(%arg0: i32, %arg1: i32, %arg2: i32, %arg3: i32) -> (i32, i32, i32) {
    %c0_i32 = arith.constant 0 : i32
    %c0_i32_0 = arith.constant 0 : i32
    %c0_i32_1 = arith.constant 0 : i32
    return %arg1, %c0_i32, %c0_i32_0 : i32, i32, i32
  }
  func.func @transform_2(%arg0: i32, %arg1: i32, %arg2: i32, %arg3: i32) -> (i32, i32, i32, i32) {
    %c0_i32 = arith.constant 0 : i32
    %c0_i32_0 = arith.constant 0 : i32
    %c0_i32_1 = arith.constant 0 : i32
    return %arg0, %arg1, %c0_i32, %c0_i32_0 : i32, i32, i32, i32
  }
  func.func @transform_3(%arg0: i32, %arg1: i32, %arg2: i32, %arg3: i32) -> (i32, i32, i32, i32) {
    %c0_i32 = arith.constant 0 : i32
    %c0_i32_0 = arith.constant 0 : i32
    %c0_i32_1 = arith.constant 0 : i32
    return %arg0, %arg1, %c0_i32, %c0_i32_0 : i32, i32, i32, i32
  }
}

</mosaic_0001>

<llo_original>
// kernel: tpu_custom_call.1
$region0: #{tpu_custom_call.1}
  #allocation0 [shape = 'u32[]', space=smem, size = 0x4, offset = 0x4, fixed_abs, tag = 'smem constant byte address 0x4 - core index']
  #allocation1 [shape = 'u32[144,128]{1,0:T(1,128)}', space=vmem, size = 0x12000, scoped, tag = 'internal scratch']
  %s0 = inlined_call_operand.hbm [shape: f32[2,1,4,256], index: 0, kind: input, shape index: {}]
  %s1 = inlined_call_operand.vmem [shape: f32[1,4,1], index: 1, kind: input, shape index: {}]
  %s2 = inlined_call_operand.vmem [shape: f32[2,1,4,1], index: 2, kind: output, shape index: {0}]
  %s3 = inlined_call_operand.hbm [shape: f32[2,1,4,4], index: 3, kind: output, shape index: {1}]
  %4 = xla_tuple %s2, %s3
  %s5 = sld [smem:[#allocation0]]
  $region57: #{tpu_custom_call.1} parent=0
    _
  %s7 = ssub.s32 1, %s5
  %s8 = scalar_select 0, %s7, %s5
  $region1: #{tpu_custom_call.1} parent=0
    #allocation2 [shape = 'u8[8192]{0}', space=vmem, size = 0x2000, scoped, tag = 'input window, operand 0']
    #allocation3 [shape = 's32[2]{0}', space=sflag, size = 0x8, scoped, tag = 'scoped memory for tpu_custom_call.1']
    #allocation4 [shape = 's32[2]{0}', space=sflag, size = 0x8, scoped, tag = 'scoped memory for tpu_custom_call.1']
    #allocation5 [shape = 'u8[4096]{0}', space=vmem, size = 0x1000, scoped, tag = 'output window, operand 1']
    %9 = vsyncpa [#allocation3], 0
    %s10 = scalar_lea.sflag [#allocation3], 1
    %11 = vsyncpa %s10, 0
    %12 = vsyncpa [#allocation4], 0
    %s13 = scalar_lea.sflag [#allocation4], 1
    %14 = vsyncpa %s13, 0
    loop: start=0, step=1, limit=4
    $region2: #{tpu_custom_call.1} parent=1 // loop_pre_header
      _
    $region3: #{tpu_custom_call.1} parent=1 // loop_header
      %s16 = sphi 0, %s20
      %p17 = scmp.ge.s32.totalorder %s16, 4
      %s23 = sphi 0, %s49
      %s24 = sphi 0, %s45
      %s25 = sphi 0, %s41
      %s26 = sphi 0, %s37
      %s27 = sphi 0, %s23
      %s28 = sphi 0, %s24
      %s29 = sphi 0, %s25
      %s30 = sphi 0, %s26
      %s31 = sphi 0, %s27
      %s32 = sphi 0, %s28
      %s33 = sphi 0, %s29
      %s34 = sphi 0, %s30
      %s58 = sphi 0, %s60
      %s61 = sphi 0, %s58
      %s62 = sphi 0, %s61
      %s78 = sphi 0, %s62
      %s84 = sphi 0, %s86
      %s87 = sphi 0, %s84
      %s88 = sphi 0, %s87
      %s104 = sphi 0, %s88
      %s112 = sphi 0, %s114
      %s115 = sphi 0, %s112
      %s116 = sphi 0, %s115
      %s132 = sphi 0, %s116
      %s140 = sphi 0, %s142
      %s143 = sphi 0, %s140
      %s144 = sphi 0, %s143
      %s160 = sphi 0, %s144
    $region4: #{tpu_custom_call.1} parent=1 // loop_header_branch
      %19 = sbr.rel (%p17) target = $region8
    $region5: #{tpu_custom_call.1} parent=1 // loop_body
      %s21 = ssub.s32 %s16, 1
      %s22 = ssub.s32 %s16, 2
      %s35 = sadd.s32 1, %s26
      %p36 = scmp.ge.s32.totalorder %s35, 1
      %s37 = scalar_select %p36, 0, %s35
      %s38 = sadd.s32 1, %s25
      %s39 = scalar_select %p36, %s38, %s25
      %p40 = scmp.ge.s32.totalorder %s39, 1
      %s41 = scalar_select %p40, 0, %s39
      %s42 = sadd.s32 1, %s24
      %s43 = scalar_select %p40, %s42, %s24
      %p44 = scmp.ge.s32.totalorder %s43, 1
      %s45 = scalar_select %p44, 0, %s43
      %s46 = sadd.s32 1, %s23
      %s47 = scalar_select %p44, %s46, %s23
      %p48 = scmp.ge.s32.totalorder %s47, 2
      %s49 = scalar_select %p48, 0, %s47
      %s50 = sadd.s32 %s23, %s25
      %s51 = sadd.s32 %s49, %s41
      %s52 = ssub.s32 %s50, %s51
      %s53 = ssub.s32 %s24, %s45
      %s54 = sor.u32 %s52, %s53
      %s55 = ssub.s32 %s26, %s37
      %s56 = sor.u32 %s54, %s55
      %p57 = scmp.eq.s32.totalorder %s56, 0
      %s59 = sadd.s32 %s58, 1
      %s60 = scalar_select %p57, %s58, %s59
      %p63 = pneg %p57
      %p64 = scmp.eq.s32.totalorder %s16, 1
      %p65 = por %p63, %p64
      %p66 = scmp.ne.s32.totalorder %s58, %s61
      %p67 = scmp.eq.s32.totalorder %s16, 0
      %p68 = por %p66, %p67
      %p69 = scmp.ne.s32.totalorder %s58, %s61
      %p70 = scmp.eq.s32.totalorder %s21, 1
      %p71 = por %p69, %p70
      %p72 = scmp.ne.s32.totalorder %s61, %s62
      %p73 = scmp.eq.s32.totalorder %s21, 0
      %p74 = por %p72, %p73
      %p75 = scmp.ne.s32.totalorder %s61, %s62
      %p76 = scmp.eq.s32.totalorder %s22, 1
      %p77 = por %p75, %p76
      %p79 = scmp.ne.s32.totalorder %s62, %s78
      %p80 = scmp.eq.s32.totalorder %s22, 0
      %p81 = por %p79, %p80
      %s82 = ssub.s32 %s24, %s45
      %p83 = scmp.eq.s32.totalorder %s82, 0
      %s85 = sadd.s32 %s84, 1
      %s86 = scalar_select %p83, %s84, %s85
      %p89 = pneg %p83
      %p90 = scmp.eq.s32.totalorder %s16, 1
      %p91 = por %p89, %p90
      %p92 = scmp.ne.s32.totalorder %s84, %s87
      %p93 = scmp.eq.s32.totalorder %s16, 0
      %p94 = por %p92, %p93
      %p95 = scmp.ne.s32.totalorder %s84, %s87
      %p96 = scmp.eq.s32.totalorder %s21, 1
      %p97 = por %p95, %p96
      %p98 = scmp.ne.s32.totalorder %s87, %s88
      %p99 = scmp.eq.s32.totalorder %s21, 0
      %p100 = por %p98, %p99
      %p101 = scmp.ne.s32.totalorder %s87, %s88
      %p102 = scmp.eq.s32.totalorder %s22, 1
      %p103 = por %p101, %p102
      %p105 = scmp.ne.s32.totalorder %s88, %s104
      %p106 = scmp.eq.s32.totalorder %s22, 0
      %p107 = por %p105, %p106
      %s108 = ssub.s32 %s23, %s49
      %s109 = ssub.s32 %s24, %s45
      %s110 = sor.u32 %s108, %s109
      %p111 = scmp.eq.s32.totalorder %s110, 0
      %s113 = sadd.s32 %s112, 1
      %s114 = scalar_select %p111, %s112, %s113
      %p117 = pneg %p111
      %p118 = scmp.eq.s32.totalorder %s16, 1
      %p119 = por %p117, %p118
      %p120 = scmp.ne.s32.totalorder %s112, %s115
      %p121 = scmp.eq.s32.totalorder %s16, 0
      %p122 = por %p120, %p121
      %p123 = scmp.ne.s32.totalorder %s112, %s115
      %p124 = scmp.eq.s32.totalorder %s21, 1
      %p125 = por %p123, %p124
      %p126 = scmp.ne.s32.totalorder %s115, %s116
      %p127 = scmp.eq.s32.totalorder %s21, 0
      %p128 = por %p126, %p127
      %p129 = scmp.ne.s32.totalorder %s115, %s116
      %p130 = scmp.eq.s32.totalorder %s22, 1
      %p131 = por %p129, %p130
      %p133 = scmp.ne.s32.totalorder %s116, %s132
      %p134 = scmp.eq.s32.totalorder %s22, 0
      %p135 = por %p133, %p134
      %s136 = ssub.s32 %s23, %s49
      %s137 = ssub.s32 %s24, %s45
      %s138 = sor.u32 %s136, %s137
      %p139 = scmp.eq.s32.totalorder %s138, 0
      %s141 = sadd.s32 %s140, 1
      %s142 = scalar_select %p139, %s140, %s141
      %p145 = pneg %p139
      %p146 = scmp.eq.s32.totalorder %s16, 1
      %p147 = por %p145, %p146
      %p148 = scmp.ne.s32.totalorder %s140, %s143
      %p149 = scmp.eq.s32.totalorder %s16, 0
      %p150 = por %p148, %p149
      %p151 = scmp.ne.s32.totalorder %s140, %s143
      %p152 = scmp.eq.s32.totalorder %s21, 1
      %p153 = por %p151, %p152
      %p154 = scmp.ne.s32.totalorder %s143, %s144
      %p155 = scmp.eq.s32.totalorder %s21, 0
      %p156 = por %p154, %p155
      %p157 = scmp.ne.s32.totalorder %s143, %s144
      %p158 = scmp.eq.s32.totalorder %s22, 1
      %p159 = por %p157, %p158
      %p161 = scmp.ne.s32.totalorder %s144, %s160
      %p162 = scmp.eq.s32.totalorder %s22, 0
      %p163 = por %p161, %p162
      %p164 = scmp.le.s32.totalorder 1, %s16
      %p165 = scmp.lt.s32.totalorder %s16, 3
      %p166 = pnand %p164, %p165
      %p167 = pneg %p166
      // Predicated region
      $region9: #{tpu_custom_call.1} parent=5 // pred_check
        _
      $region10: #{tpu_custom_call.1} parent=5 // pred_check_branch
        %169 = sbr.rel (%p166) target = $region12
      $region11: #{tpu_custom_call.1} parent=5 // pred_region
        %s170 = ssub.s32 %s16, 1
        // Predicated region
        $region13: #{tpu_custom_call.1} parent=11 // pred_check
          %p171 = pneg %p100
        $region14: #{tpu_custom_call.1} parent=11 // pred_check_branch
          %173 = sbr.rel (%p171) target = $region16
        $region15: #{tpu_custom_call.1} parent=11 // pred_region
          %p174 = scmp.lt.s32.totalorder %s28, 0
          %s175 = scalar_select %p174, %s28, 0
          %s176 = smul.addr %s175, 4
          %s177 = scalar_lea.vmem %s1, %s176
        $region16: #{tpu_custom_call.1} parent=11 // pred_fallthru
          _
      $region12: #{tpu_custom_call.1} parent=5 // pred_fallthru
        _
      %p178 = scmp.lt.s32.totalorder %s16, 2
      // Predicated region
      $region17: #{tpu_custom_call.1} parent=5 // pred_check
        %p179 = pneg %p178
      $region18: #{tpu_custom_call.1} parent=5 // pred_check_branch
        %181 = sbr.rel (%p179) target = $region20
      $region19: #{tpu_custom_call.1} parent=5 // pred_region
        // Predicated region
        $region21: #{tpu_custom_call.1} parent=19 // pred_check
          %p182 = pneg %p68
        $region22: #{tpu_custom_call.1} parent=19 // pred_check_branch
          %184 = sbr.rel (%p182) target = $region24
        $region23: #{tpu_custom_call.1} parent=19 // pred_region
          %s185 = sand.u32 %s58, 1
          %s186 = scalar_lea.sflag [#allocation3], %s185
          %s187 = sand.u32 %s58, 1
          %s188 = smul.addr %s187, 8
          %s189 = scalar_lea.vmem [#allocation2], %s188
          %s190 = sadd.s32 %s23, %s25
          %s191 = smul.u32 2, %s26
          %s193 = ssub.s32 128, 128
          %194 = vsyncadd %s186, %s193
          %s195 = smul.addr %s24, 2
          %s196 = sadd.s32 %s191, %s195
          %s197 = smul.addr %s190, 2
          %s198 = sadd.s32 %s196, %s197
          %s199 = smul.addr %s198, 64
          %s200 = scalar_lea.hbm %s0, %s199
          %s202 = sshll.u32 %s189, 4
          %s203 = int_to_ptr.vmem [resolvable:$true] %s202
          %205 = dma.hbm_to_vmem [thread:$0]  %s200, 128, %s203, %s186
        $region24: #{tpu_custom_call.1} parent=19 // pred_fallthru
          _
      $region20: #{tpu_custom_call.1} parent=5 // pred_fallthru
        _
      %p206 = scmp.le.s32.totalorder 1, %s16
      %p207 = scmp.lt.s32.totalorder %s16, 3
      %p208 = pnand %p206, %p207
      %p209 = pneg %p208
      // Predicated region
      $region25: #{tpu_custom_call.1} parent=5 // pred_check
        _
      $region26: #{tpu_custom_call.1} parent=5 // pred_check_branch
        %211 = sbr.rel (%p208) target = $region28
      $region27: #{tpu_custom_call.1} parent=5 // pred_region
        %s212 = ssub.s32 %s16, 1
        %s213 = sand.u32 %s61, 1
        %s214 = scalar_lea.sflag [#allocation3], %s213
        %s215 = sand.u32 %s61, 1
        %s216 = smul.addr %s215, 8
        %s217 = scalar_lea.vmem [#allocation2], %s216
        // Predicated region
        $region29: #{tpu_custom_call.1} parent=27 // pred_check
          %p218 = pneg %p74
        $region30: #{tpu_custom_call.1} parent=27 // pred_check_branch
          %220 = sbr.rel (%p218) target = $region32
        $region31: #{tpu_custom_call.1} parent=27 // pred_region
          %221 = dma.done %s214, 128
        $region32: #{tpu_custom_call.1} parent=27 // pred_fallthru
          _
        %s222 = sand.u32 %s61, 1
        %s223 = scalar_lea.sflag [#allocation3], %s222
        %s224 = sand.u32 %s61, 1
        %s225 = smul.addr %s224, 8
        %s226 = scalar_lea.vmem [#allocation2], %s225
        %p227 = pneg %p74
        %p228 = pneg %p71
        %p229 = scmp.lt.s32.totalorder %s28, 0
        %s230 = scalar_select %p229, %s28, 0
        %s231 = smul.addr %s230, 4
        %s232 = scalar_lea.vmem %s1, %s231
        %p233 = pneg %p100
        %p234 = pneg %p97
        %p235 = pneg %p128
        %p236 = pneg %p125
        %p237 = scmp.lt.s32.totalorder %s27, 1
        %s238 = scalar_select %p237, %s27, 1
        %p239 = scmp.lt.s32.totalorder %s28, 0
        %s240 = scalar_select %p239, %s28, 0
        %s241 = sadd.s32 %s240, %s238
        %s242 = smul.addr %s241, 4
        %s243 = scalar_lea.vmem %s2, %s242
        %p244 = pneg %p156
        %p245 = pneg %p153
        %s246 = sand.u32 %s143, 1
        %s247 = scalar_lea.sflag [#allocation4], %s246
        %s248 = sand.u32 %s143, 1
        %s249 = smul.addr %s248, 4
        %s250 = scalar_lea.vmem [#allocation5], %s249
        %s251 = sadd.s32 %s27, %s29
        %s252 = smul.u32 2, %s30
        %p253 = scmp.lt.s32.totalorder %s28, 0
        %s254 = scalar_select %p253, %s28, 0
        %s255 = smul.addr %s254, 4
        %s256 = scalar_lea.vmem %s1, %s255
        %p257 = scmp.lt.s32.totalorder %s27, 1
        %s258 = scalar_select %p257, %s27, 1
        %p259 = scmp.lt.s32.totalorder %s28, 0
        %s260 = scalar_select %p259, %s28, 0
        %s261 = sadd.s32 %s260, %s258
        %s262 = smul.addr %s261, 4
        %s263 = scalar_lea.vmem %s2, %s262
        %p264 = scmp.eq.s32.totalorder %s29, 0
        %p265 = scmp.eq.s32.totalorder %s30, 0
        %p266 = pnand %p264, %p265
        %p267 = pneg %p266
        // Predicated region
        $region33: #{tpu_custom_call.1} parent=27 // pred_check
          _
        $region34: #{tpu_custom_call.1} parent=27 // pred_check_branch
          %269 = sbr.rel (%p266) target = $region36
        $region35: #{tpu_custom_call.1} parent=27 // pred_region
          %vm270 = vcmask 3072
          %271 = vst.msk [vmem:[%s263] sm:$0xf] %vm270, 0.0
          %vm272 = vcmask 27648
          %273 = vst.msk [vmem:[%s250] sm:$0xf] %vm272, 0.0
        $region36: #{tpu_custom_call.1} parent=27 // pred_fallthru
          _
        %v274 = vld [vmem:[%s256] sm:$0xf]
        %v275 = vld [vmem:[%s263] sm:$0xf]
        %v276 = vld [vmem:[%s250] sm:$0xf]
        %v277 = vld [vmem:[%s217] sm:$0xff]
        %279 = vset.pattern.permute.xlu0 0
        %280 = vperm.xlu0 %279, %v274
        %v281 = vpop.permute.xlu0 %280
        %v283 = vunpack.c.l.s4 839922192
        %v284 = vunpack.c.0.s8 %v283
        %v285 = vlaneseq
        %v286 = vshrl.u32 %v285, 7
        %v287 = vsub.s32 %v284, %v286
        %v288 = vrot.slane %v281, %v287
        %v290 = vsub.f32 %v277, %v288
        %v292 = vcombine.high %v290, %v290
        %vm294 = vcmask 1043456
        %v295 = vsel %vm294, %v290, 0.0
        %v296 = vsel %vm294, %v292, 0.0
        %v297 = vadd.f32 %v295, %v296
        %298 = vadd.xlane.f32.xlu0 %v297
        %v299 = vpop.xlane.xlu0 %298
        %v300 = vadd.f32 %v275, %v299
        %301 = vmatprep.subr.mxu0 %v292
        %302 = vmatpush1.xpose.msra.mxu0 %v290
        %303 = vmatprep.subr.mxu0 0.0
        %304 = vmatpush1.xpose.msra.mxu0 0.0
        %305 = vmatprep.subr.mxu0 0.0
        %306 = vmatpush1.xpose.msra.mxu0 0.0
        %307 = vmatprep.subr.mxu0 0.0
        %308 = vmatpush1.xpose.msra.mxu0 0.0
        %309 = vmatprep.subr.mxu0 0.0
        %310 = vmatpush1.xpose.msra.mxu0 0.0
        %311 = vmatprep.subr.mxu0 0.0
        %312 = vmatpush1.xpose.msra.mxu0 0.0
        %313 = vmatprep.subr.mxu0 0.0
        %314 = vmatpush1.xpose.msra.mxu0 0.0
        %315 = vmatprep.subr.mxu0 0.0
        %316 = vmatpush1.xpose.msra.mxu0 0.0
        %317 = vmatprep.subr.mxu0 0.0
        %318 = vmatpush1.xpose.msra.mxu0 0.0
        %319 = vmatprep.subr.mxu0 0.0
        %320 = vmatpush1.xpose.msra.mxu0 0.0
        %321 = vmatprep.subr.mxu0 0.0
        %322 = vmatpush1.xpose.msra.mxu0 0.0
        %323 = vmatprep.subr.mxu0 0.0
        %324 = vmatpush1.xpose.msra.mxu0 0.0
        %325 = vmatprep.subr.mxu0 0.0
        %326 = vmatpush1.xpose.msra.mxu0 0.0
        %327 = vmatprep.subr.mxu0 0.0
        %328 = vmatpush1.xpose.msra.mxu0 0.0
        %329 = vmatprep.subr.mxu0 0.0
        %330 = vmatpush1.xpose.msra.mxu0 0.0
        %331 = vmatprep.subr.mxu0 0.0
        %332 = vmatpush1.xpose.msra.mxu0 0.0
        %333 = vmatprep.subr.mxu0 0.0
        %334 = vmatpush1.xpose.msra.mxu0 0.0
        %335 = vmatprep.subr.mxu0 0.0
        %336 = vmatpush1.xpose.msra.mxu0 0.0
        %337 = vmatprep.subr.mxu0 0.0
        %338 = vmatpush1.xpose.msra.mxu0 0.0
        %339 = vmatprep.subr.mxu0 0.0
        %340 = vmatpush1.xpose.msra.mxu0 0.0
        %341 = vmatprep.subr.mxu0 0.0
        %342 = vmatpush1.xpose.msra.mxu0 0.0
        %343 = vmatprep.subr.mxu0 0.0
        %344 = vmatpush1.xpose.msra.mxu0 0.0
        %345 = vmatprep.subr.mxu0 0.0
        %346 = vmatpush1.xpose.msra.mxu0 0.0
        %347 = vmatprep.subr.mxu0 0.0
        %348 = vmatpush1.xpose.msra.mxu0 0.0
        %349 = vmatprep.subr.mxu0 0.0
        %350 = vmatpush1.xpose.msra.mxu0 0.0
        %351 = vmatprep.subr.mxu0 0.0
        %352 = vmatpush1.xpose.msra.mxu0 0.0
        %353 = vmatprep.subr.mxu0 0.0
        %354 = vmatpush1.xpose.msra.mxu0 0.0
        %355 = vmatprep.subr.mxu0 0.0
        %356 = vmatpush1.xpose.msra.mxu0 0.0
        %357 = vmatprep.subr.mxu0 0.0
        %358 = vmatpush1.xpose.msra.mxu0 0.0
        %359 = vmatprep.subr.mxu0 0.0
        %360 = vmatpush1.xpose.msra.mxu0 0.0
        %361 = vmatprep.subr.mxu0 0.0
        %362 = vmatpush1.xpose.msra.mxu0 0.0
        %363 = vmatprep.subr.mxu0 0.0
        %364 = vmatpush1.xpose.msra.mxu0 0.0
        %365 = vmatprep.mubr.f32.mxu0 %v292
        %366 = vmatmul.mubr.f32.gmra.mrb[0].mxu0 %v290
        %v367 = vpop.f32.mrb[0].mxu0
        %v368 = vadd.f32 0.0, %v367
        %v369 = vpop.f32.mrb[0].mxu0
        %370 = vdwg.mxu0
        %v371 = vadd.f32 %v276, %v368
        %vm372 = vcmask 3072
        %373 = vst.msk [vmem:[%s263] sm:$0xf] %vm372, %v300
        %vm374 = vcmask 27648
        %375 = vst.msk [vmem:[%s250] sm:$0xf] %vm374, %v371
        %p376 = scmp.lt.s32.totalorder %s27, 1
        %s377 = scalar_select %p376, %s27, 1
        %p378 = scmp.lt.s32.totalorder %s28, 0
        %s379 = scalar_select %p378, %s28, 0
        %s380 = sadd.s32 %s379, %s377
        %s381 = smul.addr %s380, 4
        %s382 = scalar_lea.vmem %s2, %s381
        %s383 = sand.u32 %s143, 1
        %s384 = scalar_lea.sflag [#allocation4], %s383
        %s385 = sand.u32 %s143, 1
        %s386 = smul.addr %s385, 4
        %s387 = scalar_lea.vmem [#allocation5], %s386
        // Predicated region
        $region37: #{tpu_custom_call.1} parent=27 // pred_check
          %p388 = pneg %p125
        $region38: #{tpu_custom_call.1} parent=27 // pred_check_branch
          %390 = sbr.rel (%p388) target = $region40
        $region39: #{tpu_custom_call.1} parent=27 // pred_region
          _
        $region40: #{tpu_custom_call.1} parent=27 // pred_fallthru
          _
        // Predicated region
        $region41: #{tpu_custom_call.1} parent=27 // pred_check
          %p391 = pneg %p153
        $region42: #{tpu_custom_call.1} parent=27 // pred_check_branch
          %393 = sbr.rel (%p391) target = $region44
        $region43: #{tpu_custom_call.1} parent=27 // pred_region
          %s395 = ssub.s32 64, 64
          %396 = vsyncadd %s384, %s395
          %s397 = sadd.s32 %s28, %s27
          %s398 = smul.addr %s397, 64
          %s399 = scalar_lea.hbm %s3, %s398
          %s401 = sshll.u32 %s387, 4
          %s402 = int_to_ptr.vmem [resolvable:$true] %s401
          %404 = dma.vmem_to_hbm [thread:$0]  %s402, 64, %s399, %s384
        $region44: #{tpu_custom_call.1} parent=27 // pred_fallthru
          _
      $region28: #{tpu_custom_call.1} parent=5 // pred_fallthru
        _
      %p405 = scmp.le.s32.totalorder 2, %s16
      // Predicated region
      $region45: #{tpu_custom_call.1} parent=5 // pred_check
        %p406 = pneg %p405
      $region46: #{tpu_custom_call.1} parent=5 // pred_check_branch
        %408 = sbr.rel (%p406) target = $region48
      $region47: #{tpu_custom_call.1} parent=5 // pred_region
        %s409 = ssub.s32 %s16, 2
        // Predicated region
        $region49: #{tpu_custom_call.1} parent=47 // pred_check
          %p410 = pneg %p131
        $region50: #{tpu_custom_call.1} parent=47 // pred_check_branch
          %412 = sbr.rel (%p410) target = $region52
        $region51: #{tpu_custom_call.1} parent=47 // pred_region
          %p413 = scmp.lt.s32.totalorder %s31, 1
          %s414 = scalar_select %p413, %s31, 1
          %p415 = scmp.lt.s32.totalorder %s32, 0
          %s416 = scalar_select %p415, %s32, 0
          %s417 = sadd.s32 %s416, %s414
          %s418 = smul.addr %s417, 4
          %s419 = scalar_lea.vmem %s2, %s418
        $region52: #{tpu_custom_call.1} parent=47 // pred_fallthru
          _
        // Predicated region
        $region53: #{tpu_custom_call.1} parent=47 // pred_check
          %p420 = pneg %p159
        $region54: #{tpu_custom_call.1} parent=47 // pred_check_branch
          %422 = sbr.rel (%p420) target = $region56
        $region55: #{tpu_custom_call.1} parent=47 // pred_region
          %s423 = sand.u32 %s144, 1
          %s424 = scalar_lea.sflag [#allocation4], %s423
          %s425 = sand.u32 %s144, 1
          %s426 = smul.addr %s425, 4
          %s427 = scalar_lea.vmem [#allocation5], %s426
          %428 = dma.done %s424, 64
        $region56: #{tpu_custom_call.1} parent=47 // pred_fallthru
          _
      $region48: #{tpu_custom_call.1} parent=5 // pred_fallthru
        _
    $region6: #{tpu_custom_call.1} parent=1 // loop_footer
      %s20 = sadd.s32 1, %s16
    $region7: #{tpu_custom_call.1} parent=1 // loop_footer_branch
      %15 = sbr.rel target = $region3
    $region8: #{tpu_custom_call.1} parent=1 // loop_exit
      _
    %429 = vsyncpa [#allocation3], 1
    %s430 = scalar_lea.sflag [#allocation3], 1
    %431 = vsyncpa %s430, 1
    %432 = vsyncpa [#allocation4], 1
    %s433 = scalar_lea.sflag [#allocation4], 1
    %434 = vsyncpa %s433, 1

</llo_original>
